<compile_context>
chip_gen: v6e
topology: v6e:2x2x1
jax: 0.10.0
libtpu: 0.0.40
codegen_flags: <defaults>
</compile_context>

<pallas_src>
import functools

import jax
import jax.numpy as jnp
from jax.experimental import pallas as pl
from jax.experimental.pallas import tpu as pltpu


def _choose_tile_rows(batch, actions, p_dtype, pi_dtype, tile_bytes,
                      max_tile_rows):
    """Pick a sublane-aligned row-tile so each policy tile is ~tile_bytes."""
    min_item = min(jnp.dtype(p_dtype).itemsize, jnp.dtype(pi_dtype).itemsize)
    max_item = max(jnp.dtype(p_dtype).itemsize, jnp.dtype(pi_dtype).itemsize)
    sub = 8 * max(1, 4 // min_item)       # packed-sublane multiple: 8/16/32
    row_bytes = max(1, actions * max_item)
    tb = max(sub, (tile_bytes // row_bytes) // sub * sub)
    if max_tile_rows is not None:
        tb = min(tb, max(sub, (max_tile_rows // sub) * sub))
    if tb >= batch:
        return batch                      # single full-extent block: always legal
    return tb


def _alphazero_loss_kernel(p_ref, pi_ref, v_ref, z_ref, out_ref, acc_ref, *,
                           batch, tile_rows, needs_mask, inv_batch):
    i = pl.program_id(0)

    @pl.when(i == 0)
    def _init():
        acc_ref[...] = jnp.zeros_like(acc_ref)

    # f32 accumulate of sum(pi * p) over this row tile.
    prod = pi_ref[...].astype(jnp.float32) * p_ref[...].astype(jnp.float32)
    if needs_mask:
        # Ragged last tile: rows past the true batch hold stale VMEM data.
        row = jax.lax.broadcasted_iota(jnp.int32, prod.shape, 0)
        prod = jnp.where(i * tile_rows + row < batch, prod, 0.0)
    acc_ref[...] += jnp.sum(prod)

    @pl.when(i == pl.num_programs(0) - 1)
    def _finalize():
        dv = z_ref[...].astype(jnp.float32) - v_ref[...].astype(jnp.float32)
        sum_v = jnp.sum(dv * dv)
        # mean_b[(z-v)^2 + sum_a(-pi*p)] == (sum((z-v)^2) - sum(pi*p)) / B
        out_ref[...] = (sum_v - acc_ref[...]) * inv_batch


def alphazero_loss(p, pi, v, z, *, tile_bytes=2 << 20, max_tile_rows=None):
    """p, pi: (B, A); v, z: (B, 1) or (B,). Returns scalar f32 loss."""
    if v.ndim == 1:
        v = v[:, None]
    if z.ndim == 1:
        z = z[:, None]
    B, A = p.shape
    assert pi.shape == (B, A) and v.shape == (B, 1) and z.shape == (B, 1)

    tb = _choose_tile_rows(B, A, p.dtype, pi.dtype, tile_bytes, max_tile_rows)
    num_tiles = -(-B // tb)
    needs_mask = (B % tb) != 0

    # Lane-major value rows (free reshape, no padding / no copy).
    v_row = v.reshape(1, B)
    z_row = z.reshape(1, B)

    kernel = functools.partial(
        _alphazero_loss_kernel,
        batch=B, tile_rows=tb, needs_mask=needs_mask, inv_batch=1.0 / B)

    out = pl.pallas_call(
        kernel,
        out_shape=jax.ShapeDtypeStruct((1, 1), jnp.float32),
        grid_spec=pltpu.PrefetchScalarGridSpec(
            num_scalar_prefetch=0,
            grid=(num_tiles,),
            in_specs=[
                # Natural (B, A) layout: last block dim == full array dim, so
                # no lane padding / no wrapper copies; contiguous row DMAs.
                pl.BlockSpec((tb, A), lambda i: (i, 0)),
                pl.BlockSpec((tb, A), lambda i: (i, 0)),
                pl.BlockSpec((1, B), lambda i: (0, 0)),
                pl.BlockSpec((1, B), lambda i: (0, 0)),
            ],
            out_specs=pl.BlockSpec((1, 1), lambda i: (0, 0)),
            scratch_shapes=[pltpu.VMEM((1, 1), jnp.float32)],
        ),
        compiler_params=pltpu.CompilerParams(
            dimension_semantics=("arbitrary",),   # reduction/accumulator axis
        ),
    )(p, pi, v_row, z_row)
    return out[0, 0]


def alphazero_loss_ref(p, pi, v, z):
    """Pure-JAX reference matching the PyTorch forward exactly."""
    if v.ndim == 1:
        v = v[:, None]
    if z.ndim == 1:
        z = z[:, None]
    loss_v = (z - v) ** 2
    loss_p = jnp.sum(-pi * p, axis=1)
    return jnp.mean(loss_v.reshape(-1) + loss_p)


if __name__ == "__main__":
    key = jax.random.PRNGKey(0)
    k1, k2, k3, k4 = jax.random.split(key, 4)

    # --- Test 1: small spec-like shape, f32, single-tile path --------------
    B, A = 8, 64
    logits = jax.random.normal(k1, (B, A), dtype=jnp.float32)
    p = jax.nn.log_softmax(logits, axis=1)
    pi = jax.nn.softmax(jax.random.normal(k2, (B, A), dtype=jnp.float32), axis=1)
    v = jnp.tanh(jax.random.normal(k3, (B, 1), dtype=jnp.float32))
    z = jnp.tanh(jax.random.normal(k4, (B, 1), dtype=jnp.float32))

    loss = alphazero_loss(p, pi, v, z)
    jax.block_until_ready(loss)
    loss_ref = alphazero_loss_ref(p, pi, v, z)
    assert jnp.allclose(loss, loss_ref, rtol=1e-5, atol=1e-6), (loss, loss_ref)

    # --- Test 2: bf16, ragged action dim, forced multi-tile + ragged tail --
    B2, A2 = 40, 200
    k5, k6, k7, k8 = jax.random.split(jax.random.PRNGKey(1), 4)
    p2 = jax.nn.log_softmax(
        jax.random.normal(k5, (B2, A2), dtype=jnp.float32), axis=1
    ).astype(jnp.bfloat16)
    pi2 = jax.nn.softmax(
        jax.random.normal(k6, (B2, A2), dtype=jnp.float32), axis=1
    ).astype(jnp.bfloat16)
    v2 = jnp.tanh(jax.random.normal(k7, (B2,), dtype=jnp.float32)).astype(jnp.bfloat16)
    z2 = jnp.tanh(jax.random.normal(k8, (B2,), dtype=jnp.float32)).astype(jnp.bfloat16)

    # max_tile_rows=16 -> tb=16 (bf16 packed sublane), 3 grid steps, last tile
    # ragged (40 % 16 = 8): exercises init/accumulate/finalize + the row mask.
    loss2 = alphazero_loss(p2, pi2, v2, z2, max_tile_rows=16)
    jax.block_until_ready(loss2)
    loss2_ref = alphazero_loss_ref(
        p2.astype(jnp.float32), pi2.astype(jnp.float32),
        v2.astype(jnp.float32), z2.astype(jnp.float32))
    assert jnp.allclose(loss2, loss2_ref, rtol=1e-5, atol=1e-5), (loss2, loss2_ref)

    # --- Test 3: f32 multi-tile with ragged tail ----------------------------
    B3, A3 = 20, 160
    k9, k10, k11, k12 = jax.random.split(jax.random.PRNGKey(2), 4)
    p3 = jax.nn.log_softmax(jax.random.normal(k9, (B3, A3), jnp.float32), axis=1)
    pi3 = jax.nn.softmax(jax.random.normal(k10, (B3, A3), jnp.float32), axis=1)
    v3 = jnp.tanh(jax.random.normal(k11, (B3, 1), jnp.float32))
    z3 = jnp.tanh(jax.random.normal(k12, (B3, 1), jnp.float32))

    loss3 = alphazero_loss(p3, pi3, v3, z3, max_tile_rows=8)   # tb=8, 3 steps, ragged
    jax.block_until_ready(loss3)
    loss3_ref = alphazero_loss_ref(p3, pi3, v3, z3)
    assert jnp.allclose(loss3, loss3_ref, rtol=1e-5, atol=1e-6), (loss3, loss3_ref)

    print("KERNEL_OK")
</pallas_src>

<mosaic_0001>
module attributes {stable_mosaic.version = 11 : i64} {
  func.func @_alphazero_loss_kernel(%arg0: i32, %arg1: memref<8x64xf32, #tpu.memory_space<vmem>>, %arg2: memref<8x64xf32, #tpu.memory_space<vmem>>, %arg3: memref<1x8xf32, #tpu.memory_space<vmem>>, %arg4: memref<1x8xf32, #tpu.memory_space<vmem>>, %arg5: memref<1x1xf32, #tpu.memory_space<vmem>>, %arg6: memref<1x1xf32, #tpu.memory_space<vmem>>) attributes {dimension_semantics = [#tpu.dimension_semantics<arbitrary>], iteration_bounds = array<i64: 1>, scalar_prefetch = 0 : i64, scratch_operands = 1 : i64, tpu.core_type = #tpu.core_type<tc>, window_params = [{transform_indices = @transform_0, window_bounds = array<i64: 8, 64>}, {transform_indices = @transform_1, window_bounds = array<i64: 8, 64>}, {pipeline_mode = #tpu.pipeline_mode<synchronous>, transform_indices = @transform_2, window_bounds = array<i64: 1, 8>}, {pipeline_mode = #tpu.pipeline_mode<synchronous>, transform_indices = @transform_3, window_bounds = array<i64: 1, 8>}, {pipeline_mode = #tpu.pipeline_mode<synchronous>, transform_indices = @transform_4, window_bounds = array<i64: 1, 1>}]} {
    %c0_i32 = arith.constant 0 : i32
    %0 = arith.cmpi eq, %arg0, %c0_i32 : i32
    %1 = arith.extui %0 : i1 to i32
    %c0_i32_0 = arith.constant 0 : i32
    %2 = arith.cmpi ne, %1, %c0_i32_0 : i32
    scf.if %2 {
      %cst_10 = arith.constant 0.000000e+00 : f32
      %17 = vector.broadcast %cst_10 : f32 to vector<1x1xf32>
      %c0_11 = arith.constant 0 : index
      %c0_12 = arith.constant 0 : index
      %18 = vector.load %arg6[%c0_11, %c0_12] : memref<1x1xf32, #tpu.memory_space<vmem>>, vector<1x1xf32>
      tpu.vector_store %arg6[%c0_11, %c0_12], %17 {strides = array<i32>} : memref<1x1xf32, #tpu.memory_space<vmem>>, vector<1x1xf32>,
    } else {
    }
    %c0 = arith.constant 0 : index
    %c0_1 = arith.constant 0 : index
    %3 = vector.load %arg2[%c0, %c0_1] : memref<8x64xf32, #tpu.memory_space<vmem>>, vector<8x64xf32>
    %c0_2 = arith.constant 0 : index
    %c0_3 = arith.constant 0 : index
    %4 = vector.load %arg1[%c0_2, %c0_3] : memref<8x64xf32, #tpu.memory_space<vmem>>, vector<8x64xf32>
    %5 = arith.mulf %3, %4 : vector<8x64xf32>
    %c0_4 = arith.constant 0 : index
    %c0_5 = arith.constant 0 : index
    %6 = vector.load %arg6[%c0_4, %c0_5] : memref<1x1xf32, #tpu.memory_space<vmem>>, vector<1x1xf32>
    %7 = vector.shape_cast %5 : vector<8x64xf32> to vector<1x8x64xf32>
    %cst = arith.constant dense<0.000000e+00> : vector<1xf32>
    %8 = vector.multi_reduction <add>, %7, %cst [1, 2] : vector<1x8x64xf32> to vector<1xf32>
    %9 = vector.shape_cast %8 : vector<1xf32> to vector<1x1x1xf32>
    %10 = vector.extract %9[0, 0, 0] : f32 from vector<1x1x1xf32>
    %11 = vector.broadcast %10 : f32 to vector<1x1xf32>
    %12 = arith.addf %6, %11 : vector<1x1xf32>
    %c0_6 = arith.constant 0 : index
    %c0_7 = arith.constant 0 : index
    %13 = vector.load %arg6[%c0_6, %c0_7] : memref<1x1xf32, #tpu.memory_space<vmem>>, vector<1x1xf32>
    tpu.vector_store %arg6[%c0_6, %c0_7], %12 {strides = array<i32>} : memref<1x1xf32, #tpu.memory_space<vmem>>, vector<1x1xf32>,
    %c0_i32_8 = arith.constant 0 : i32
    %14 = arith.cmpi eq, %arg0, %c0_i32_8 : i32
    %15 = arith.extui %14 : i1 to i32
    %c0_i32_9 = arith.constant 0 : i32
    %16 = arith.cmpi ne, %15, %c0_i32_9 : i32
    scf.if %16 {
      %c0_10 = arith.constant 0 : index
      %c0_11 = arith.constant 0 : index
      %17 = vector.load %arg4[%c0_10, %c0_11] : memref<1x8xf32, #tpu.memory_space<vmem>>, vector<1x8xf32>
      %c0_12 = arith.constant 0 : index
      %c0_13 = arith.constant 0 : index
      %18 = vector.load %arg3[%c0_12, %c0_13] : memref<1x8xf32, #tpu.memory_space<vmem>>, vector<1x8xf32>
      %19 = arith.subf %17, %18 : vector<1x8xf32>
      %20 = arith.mulf %19, %19 : vector<1x8xf32>
      %21 = vector.shape_cast %20 : vector<1x8xf32> to vector<1x1x8xf32>
      %cst_14 = arith.constant dense<0.000000e+00> : vector<1xf32>
      %22 = vector.multi_reduction <add>, %21, %cst_14 [1, 2] : vector<1x1x8xf32> to vector<1xf32>
      %23 = vector.shape_cast %22 : vector<1xf32> to vector<1x1x1xf32>
      %24 = vector.extract %23[0, 0, 0] : f32 from vector<1x1x1xf32>
      %c0_15 = arith.constant 0 : index
      %c0_16 = arith.constant 0 : index
      %25 = vector.load %arg6[%c0_15, %c0_16] : memref<1x1xf32, #tpu.memory_space<vmem>>, vector<1x1xf32>
      %26 = vector.broadcast %24 : f32 to vector<1x1xf32>
      %27 = arith.subf %26, %25 : vector<1x1xf32>
      %cst_17 = arith.constant 1.250000e-01 : f32
      %28 = vector.broadcast %cst_17 : f32 to vector<1x1xf32>
      %29 = arith.mulf %27, %28 : vector<1x1xf32>
      %c0_18 = arith.constant 0 : index
      %c0_19 = arith.constant 0 : index
      %30 = vector.load %arg5[%c0_18, %c0_19] : memref<1x1xf32, #tpu.memory_space<vmem>>, vector<1x1xf32>
      tpu.vector_store %arg5[%c0_18, %c0_19], %29 {strides = array<i32>} : memref<1x1xf32, #tpu.memory_space<vmem>>, vector<1x1xf32>,
    } else {
    }
    return
  }
  func.func @transform_0(%arg0: i32) -> (i32, i32) {
    %c0_i32 = arith.constant 0 : i32
    %c0_i32_0 = arith.constant 0 : i32
    return %arg0, %c0_i32 : i32, i32
  }
  func.func @transform_1(%arg0: i32) -> (i32, i32) {
    %c0_i32 = arith.constant 0 : i32
    %c0_i32_0 = arith.constant 0 : i32
    return %arg0, %c0_i32 : i32, i32
  }
  func.func @transform_2(%arg0: i32) -> (i32, i32) {
    %c0_i32 = arith.constant 0 : i32
    %c0_i32_0 = arith.constant 0 : i32
    %c0_i32_1 = arith.constant 0 : i32
    return %c0_i32, %c0_i32_0 : i32, i32
  }
  func.func @transform_3(%arg0: i32) -> (i32, i32) {
    %c0_i32 = arith.constant 0 : i32
    %c0_i32_0 = arith.constant 0 : i32
    %c0_i32_1 = arith.constant 0 : i32
    return %c0_i32, %c0_i32_0 : i32, i32
  }
  func.func @transform_4(%arg0: i32) -> (i32, i32) {
    %c0_i32 = arith.constant 0 : i32
    %c0_i32_0 = arith.constant 0 : i32
    %c0_i32_1 = arith.constant 0 : i32
    return %c0_i32, %c0_i32_0 : i32, i32
  }
}

</mosaic_0001>

<llo_original>
// kernel: tpu_custom_call.1
$region0: #{tpu_custom_call.1}
  #allocation0 [shape = 'u32[]', space=smem, size = 0x4, offset = 0x4, fixed_abs, tag = 'smem constant byte address 0x4 - core index']
  #allocation1 [shape = 'u32[144,128]{1,0:T(1,128)}', space=vmem, size = 0x12000, scoped, tag = 'internal scratch']
  #allocation2 [shape = 'f32[1,1]{1,0:T(1,128)}', space=vmem, size = 0x200, scoped, tag = 'scratch operand']
  %s0 = inlined_call_operand.hbm [shape: f32[8,64], index: 0, kind: input, shape index: {}]
  %s1 = inlined_call_operand.hbm [shape: f32[8,64], index: 1, kind: input, shape index: {}]
  %s2 = inlined_call_operand.vmem [shape: f32[1,8], index: 2, kind: input, shape index: {}]
  %s3 = inlined_call_operand.vmem [shape: f32[1,8], index: 3, kind: input, shape index: {}]
  %s4 = inlined_call_operand.hbm [shape: f32[1,1], index: 4, kind: output, shape index: {}]
  %s5 = sld [smem:[#allocation0]]
  $region42: #{tpu_custom_call.1} parent=0
    _
  %s7 = ssub.s32 1, %s5
  %s8 = scalar_select 0, %s7, %s5
  $region1: #{tpu_custom_call.1} parent=0
    #allocation3 [shape = 'u8[4096]{0}', space=vmem, size = 0x1000, scoped, tag = 'input window, operand 0, single buffered']
    #allocation4 [shape = 's32[1]{0}', space=sflag, size = 0x4, scoped, tag = 'scoped memory for tpu_custom_call.1']
    #allocation5 [shape = 's32[1]{0}', space=sflag, size = 0x4, scoped, tag = 'scoped memory for tpu_custom_call.1']
    #allocation6 [shape = 'u8[4096]{0}', space=vmem, size = 0x1000, scoped, tag = 'input window, operand 1, single buffered']
    #allocation7 [shape = 's32[1]{0}', space=sflag, size = 0x4, scoped, tag = 'scoped memory for tpu_custom_call.1']
    #allocation8 [shape = 'u8[512]{0}', space=vmem, size = 0x400, scoped, tag = 'output window, operand 0, single buffered']
    %9 = vsyncpa [#allocation4], 0
    %10 = vsyncpa [#allocation7], 0
    %11 = vsyncpa [#allocation5], 0
    // Predicated region
    $region2: #{tpu_custom_call.1} parent=1 // pred_check
      _
    $region3: #{tpu_custom_call.1} parent=1 // pred_check_branch
      %13 = sbr.rel (0) target = $region5
    $region4: #{tpu_custom_call.1} parent=1 // pred_region
      %s15 = ssub.s32 128, 128
      %16 = vsyncadd [#allocation4], %s15
      %s18 = sshll.u32 [#allocation3], 4
      %s19 = int_to_ptr.vmem [resolvable:$true] %s18
      %21 = dma.hbm_to_vmem [thread:$0]  %s0, 128, %s19, [#allocation4]
    $region5: #{tpu_custom_call.1} parent=1 // pred_fallthru
      _
    // Predicated region
    $region6: #{tpu_custom_call.1} parent=1 // pred_check
      _
    $region7: #{tpu_custom_call.1} parent=1 // pred_check_branch
      %23 = sbr.rel (0) target = $region9
    $region8: #{tpu_custom_call.1} parent=1 // pred_region
      %s25 = ssub.s32 128, 128
      %26 = vsyncadd [#allocation7], %s25
      %s28 = sshll.u32 [#allocation6], 4
      %s29 = int_to_ptr.vmem [resolvable:$true] %s28
      %31 = dma.hbm_to_vmem [thread:$0]  %s1, 128, %s29, [#allocation7]
    $region9: #{tpu_custom_call.1} parent=1 // pred_fallthru
      _
    // Predicated region
    $region10: #{tpu_custom_call.1} parent=1 // pred_check
      _
    $region11: #{tpu_custom_call.1} parent=1 // pred_check_branch
      %33 = sbr.rel (0) target = $region13
    $region12: #{tpu_custom_call.1} parent=1 // pred_region
      _
    $region13: #{tpu_custom_call.1} parent=1 // pred_fallthru
      _
    // Predicated region
    $region14: #{tpu_custom_call.1} parent=1 // pred_check
      _
    $region15: #{tpu_custom_call.1} parent=1 // pred_check_branch
      %35 = sbr.rel (0) target = $region17
    $region16: #{tpu_custom_call.1} parent=1 // pred_region
      _
    $region17: #{tpu_custom_call.1} parent=1 // pred_fallthru
      _
    // Predicated region
    $region18: #{tpu_custom_call.1} parent=1 // pred_check
      _
    $region19: #{tpu_custom_call.1} parent=1 // pred_check_branch
      %37 = sbr.rel (0) target = $region21
    $region20: #{tpu_custom_call.1} parent=1 // pred_region
      %38 = dma.done [#allocation4], 128
    $region21: #{tpu_custom_call.1} parent=1 // pred_fallthru
      _
    // Predicated region
    $region22: #{tpu_custom_call.1} parent=1 // pred_check
      _
    $region23: #{tpu_custom_call.1} parent=1 // pred_check_branch
      %40 = sbr.rel (0) target = $region25
    $region24: #{tpu_custom_call.1} parent=1 // pred_region
      %41 = dma.done [#allocation7], 128
    $region25: #{tpu_custom_call.1} parent=1 // pred_fallthru
      _
    %p42 = scmp.eq.s32.totalorder 0, 0
    // Predicated region
    $region26: #{tpu_custom_call.1} parent=1 // pred_check
      %p43 = pneg %p42
    $region27: #{tpu_custom_call.1} parent=1 // pred_check_branch
      %45 = sbr.rel (%p43) target = $region29
    $region28: #{tpu_custom_call.1} parent=1 // pred_region
      %vm46 = vcmask 0
      %47 = vst.msk [vmem:[#allocation2] sm:$0x1] %vm46, 0.0
    $region29: #{tpu_custom_call.1} parent=1 // pred_fallthru
      _
    %v48 = vld [vmem:[#allocation6] sm:$0xff]
    %v49 = vld [vmem:[#allocation3] sm:$0xff]
    %v50 = vmul.f32 %v48, %v49
    %v51 = vld [vmem:[#allocation2] sm:$0x1]
    %vm52 = vcmask 523264
    %v53 = vsel %vm52, %v50, 0.0
    %54 = vadd.xlane.f32.xlu0 %v53
    %v55 = vpop.xlane.xlu0 %54
    %v56 = vrot.slane %v55, 4
    %v57 = vadd.f32 %v55, %v56
    %v58 = vrot.slane %v57, 2
    %v59 = vadd.f32 %v57, %v58
    %v60 = vrot.slane %v59, 1
    %v61 = vadd.f32 %v59, %v60
    %s62 = vtos %v61
    %v63 = vstv %s62
    %v64 = vadd.f32 %v51, %v63
    %vm65 = vcmask 0
    %66 = vst.msk [vmem:[#allocation2] sm:$0x1] %vm65, %v64
    // Predicated region
    $region30: #{tpu_custom_call.1} parent=1 // pred_check
      %p67 = pneg %p42
    $region31: #{tpu_custom_call.1} parent=1 // pred_check_branch
      %69 = sbr.rel (%p67) target = $region33
    $region32: #{tpu_custom_call.1} parent=1 // pred_region
      %v70 = vld [vmem:[%s3] sm:$0x1]
      %v71 = vld [vmem:[%s2] sm:$0x1]
      %v72 = vsub.f32 %v70, %v71
      %v73 = vmul.f32 %v72, %v72
      %vm74 = vcmask 57344
      %v75 = vsel %vm74, %v73, 0.0
      %76 = vadd.xlane.f32.xlu0 %v75
      %v77 = vpop.xlane.xlu0 %76
      %v78 = vrot.slane %v77, 4
      %v79 = vadd.f32 %v77, %v78
      %v80 = vrot.slane %v79, 2
      %v81 = vadd.f32 %v79, %v80
      %v82 = vrot.slane %v81, 1
      %v83 = vadd.f32 %v81, %v82
      %s84 = vtos %v83
      %v85 = vld [vmem:[#allocation2] sm:$0x1]
      %v86 = vstv %s84
      %v87 = vsub.f32 %v86, %v85
      %v88 = vmul.f32 %v87, 0.125
      %89 = vst.msk [vmem:[#allocation8] sm:$0x1] %vm65, %v88
    $region33: #{tpu_custom_call.1} parent=1 // pred_fallthru
      _
    // Predicated region
    $region34: #{tpu_custom_call.1} parent=1 // pred_check
      _
    $region35: #{tpu_custom_call.1} parent=1 // pred_check_branch
      %91 = sbr.rel (0) target = $region37
    $region36: #{tpu_custom_call.1} parent=1 // pred_region
      %s93 = ssub.s32 16, 16
      %94 = vsyncadd [#allocation5], %s93
      %s96 = sshll.u32 [#allocation8], 4
      %s97 = int_to_ptr.vmem [resolvable:$true] %s96
      %99 = dma.vmem_to_hbm [thread:$0]  %s97, 16, %s4, [#allocation5]
    $region37: #{tpu_custom_call.1} parent=1 // pred_fallthru
      _
    // Predicated region
    $region38: #{tpu_custom_call.1} parent=1 // pred_check
      _
    $region39: #{tpu_custom_call.1} parent=1 // pred_check_branch
      %101 = sbr.rel (0) target = $region41
    $region40: #{tpu_custom_call.1} parent=1 // pred_region
      %102 = dma.done [#allocation5], 16
    $region41: #{tpu_custom_call.1} parent=1 // pred_fallthru
      _
    %103 = vsyncpa [#allocation4], 1
    %104 = vsyncpa [#allocation7], 1
    %105 = vsyncpa [#allocation5], 1

</llo_original>
